<compile_context>
chip_gen: v5e
topology: v5e:2x2
jax: 0.10.0
libtpu: 0.0.40
codegen_flags: <defaults>
</compile_context>

<pallas_src>
import jax
import jax.numpy as jnp
from jax.experimental import pallas as pl
from jax.experimental.pallas import tpu as pltpu

_MiB = 1024 * 1024


def _round_up(x, m):
    return ((x + m - 1) // m) * m


# ---------------------------------------------------------------------------
# Generation-aware sizing (v5e/v6e: 128 MiB VMEM; v7x: 64 MiB per TensorCore).
# ---------------------------------------------------------------------------

def _tpu_vmem_bytes():
    get_info = getattr(pltpu, "get_tpu_info", None)
    if get_info is not None:
        try:
            vmem = int(getattr(get_info(), "vmem_capacity_bytes", 0) or 0)
            if vmem > 0:
                return vmem
        except Exception:
            pass
    # Conservative fallback (v7x per-core VMEM); budgets derived from it remain safe on
    # the 128 MiB parts as well.
    return 64 * _MiB


def _budgets(vmem_bytes):
    # The resident table is requested single-buffered (pl.Buffered(1)); budget as if it
    # were still double-buffered so the path remains safe even if the hint is ignored.
    table_budget = min(vmem_bytes // 3, 48 * _MiB)
    vmem_limit = int(min(vmem_bytes - 16 * _MiB, 2 * table_budget + 24 * _MiB))
    return table_budget, vmem_limit


# ---------------------------------------------------------------------------
# Path 1: resident table + one-hot MXU gather (V tiled inside the kernel).
# ---------------------------------------------------------------------------

_ONEHOT_V_CHUNK = 1024   # vocab (contraction) tile inside the one-hot kernel
_ONEHOT_MAX_V = 4096     # above this the O(TM*V) one-hot VPU work dominates -> DMA gather


def _onehot_gather_kernel(idx_ref, table_ref, out_ref):
    # idx_ref: (TM, 1) int32; table_ref: (Vp, D) resident in VMEM; out_ref: (TM, D).
    tm, d = out_ref.shape
    v = table_ref.shape[0]
    tv = v if v <= _ONEHOT_V_CHUNK else _ONEHOT_V_CHUNK   # Vp is a multiple of tv

    idx = idx_ref[...]                                     # (TM, 1)
    # Hoisted out of the vocab-chunk loop: one iota per grid step, reused by every
    # chunk.  A cross-step VMEM cache under pl.when(pid == 0) would be unsafe here:
    # the "parallel" grid axis may be sharded across TensorCores on v7x, so a core
    # that never runs step 0 would read an uninitialized cache.
    col = jax.lax.broadcasted_iota(jnp.int32, (tm, tv), 1)  # (TM, tv)

    acc = jnp.zeros((tm, d), jnp.float32)
    for k in range(v // tv):                                # static, <= 4 chunks
        # Tiling V bounds the (TM, tv) one-hot temp regardless of table size.
        one_hot = (col == (idx - k * tv)).astype(table_ref.dtype)   # exact 0/1 rows
        acc = acc + jnp.dot(one_hot, table_ref[pl.ds(k * tv, tv), :],
                            preferred_element_type=jnp.float32)
    out_ref[...] = acc.astype(out_ref.dtype)


def _embed_onehot(idx_col, emb_table, tm, vmem_limit_bytes):
    n_pad = idx_col.shape[0]
    v, d = emb_table.shape
    return pl.pallas_call(
        _onehot_gather_kernel,
        out_shape=jax.ShapeDtypeStruct((n_pad, d), emb_table.dtype),
        grid=(n_pad // tm,),
        in_specs=[
            # NOTE: the (tm, 1) int32 block is lane-padded to 128 in VMEM; accepted as a
            # minor cost (a lane-dense (1, tm) layout would need an in-kernel transpose
            # before the sublane-wise one-hot broadcast).
            pl.BlockSpec((tm, 1), lambda i: (i, 0)),
            # Resident table: constant index_map -> fetched once; single-buffered so it
            # occupies VMEM only once (no point double-buffering a block that never
            # changes).
            pl.BlockSpec((v, d), lambda i: (0, 0), pipeline_mode=pl.Buffered(1)),
        ],
        out_specs=pl.BlockSpec((tm, d), lambda i: (i, 0)),
        compiler_params=pltpu.CompilerParams(
            # Row blocks are independent -> shard the grid across both TCs on v7x.
            dimension_semantics=("parallel",),
            # Explicit limit so the resident table + one-hot temps fit on v5e's small
            # default scoped-VMEM allowance and stay within v7x's 64 MiB.
            vmem_limit_bytes=vmem_limit_bytes,
        ),
    )(idx_col, emb_table)


# ---------------------------------------------------------------------------
# Path 2: batched HBM row gather (TM rows / grid step, sliding DMA window).
# ---------------------------------------------------------------------------

_GATHER_SLOTS = 8   # row DMAs kept in flight per block


def _dma_gather_kernel(idx_ref, table_hbm, out_ref, row_buf, sems):
    # idx_ref: (N_pad,) int32 in SMEM (scalar prefetch); table_hbm: (V, D) left in HBM;
    # row_buf/out_ref: (TM, D).  Gathers TM rows with a sliding window of _GATHER_SLOTS
    # in-flight row DMAs, then emits a single dense (TM, D) store.
    tm, d = out_ref.shape
    base = pl.program_id(0) * tm

    def start_row(r):
        row = idx_ref[base + r]
        pltpu.make_async_copy(
            table_hbm.at[pl.ds(row, 1), :],
            row_buf.at[pl.ds(r, 1), :],
            sems.at[r % _GATHER_SLOTS],
        ).start()

    def wait_row(r):
        pltpu.make_async_copy(
            table_hbm.at[pl.ds(0, 1), :],          # shape-only descriptor for the wait
            row_buf.at[pl.ds(r, 1), :],
            sems.at[r % _GATHER_SLOTS],
        ).wait()

    @pl.loop(0, min(_GATHER_SLOTS, tm))
    def _(r):
        start_row(r)

    @pl.loop(0, tm)
    def _(r):
        wait_row(r)

        @pl.when(r + _GATHER_SLOTS < tm)
        def _():
            start_row(r + _GATHER_SLOTS)

    out_ref[...] = row_buf[...]                    # one unmasked lane/sublane-dense store


def _embed_dma_gather(flat_idx, emb_table, tm):
    n_pad = flat_idx.shape[0]
    v, d = emb_table.shape
    return pl.pallas_call(
        _dma_gather_kernel,
        out_shape=jax.ShapeDtypeStruct((n_pad, d), emb_table.dtype),
        grid_spec=pltpu.PrefetchScalarGridSpec(
            num_scalar_prefetch=1,
            grid=(n_pad // tm,),
            in_specs=[pl.BlockSpec(memory_space=pl.ANY)],        # table stays in HBM
            out_specs=pl.BlockSpec((tm, d), lambda i, idx: (i, 0)),
            scratch_shapes=[
                pltpu.VMEM((tm, d), emb_table.dtype),
                pltpu.SemaphoreType.DMA((_GATHER_SLOTS,)),
            ],
        ),
        compiler_params=pltpu.CompilerParams(
            # Independent row blocks -> both TensorCores on v7x.  Buffers here are tiny,
            # so the default scoped-VMEM limit is plenty (no explicit vmem_limit_bytes).
            dimension_semantics=("parallel",),
        ),
    )(flat_idx, emb_table)


# ---------------------------------------------------------------------------
# Wrapper
# ---------------------------------------------------------------------------

def _pick_tm_onehot(v, d, n, vmem_bytes):
    # Bigger row blocks amortize the ~0.35 us/step pipeline overhead; go to 512 on the
    # 128 MiB-VMEM parts (v5e/v6e) for small vocabs / moderate D, keep 256 on v7x.
    tm = 512 if (v <= 512 and d <= 2048 and vmem_bytes >= 96 * _MiB) else 256
    return min(tm, _round_up(n, 8))


def item_encoder_forward(indices, emb_table, *, onehot_max_v=_ONEHOT_MAX_V):
    """Pallas equivalent of ItemEncoder.forward: out[b, s] = emb_table[indices[b, s]].

    Notes:
      * torch.nn.Embedding raises on out-of-range indices; here they are clamped so the
        gather never reads OOB (semantic divergence only for invalid inputs).
      * The one-hot gather is exact for bf16 tables too; storing the table in bf16
        doubles the vocab that fits the resident path and hits the native-rate MXU on
        v6e/v7x.
    """
    b, s = indices.shape
    v, d = emb_table.shape
    n = b * s

    flat_idx = jnp.clip(indices.reshape(-1).astype(jnp.int32), 0, v - 1)

    vmem_bytes = _tpu_vmem_bytes()
    table_budget, vmem_limit = _budgets(vmem_bytes)
    table_bytes = v * d * emb_table.dtype.itemsize

    # One-hot MXU gather only while (a) the table fits comfortably in VMEM and (b) the
    # per-block O(TM*V) one-hot VPU work stays below the HBM-row-gather roofline.
    if table_bytes <= table_budget and v <= onehot_max_v:
        tm = _pick_tm_onehot(v, d, n, vmem_bytes)
        n_pad = _round_up(n, tm)
        idx = jnp.pad(flat_idx, (0, n_pad - n)) if n_pad != n else flat_idx
        tv = v if v <= _ONEHOT_V_CHUNK else _ONEHOT_V_CHUNK
        v_pad = _round_up(v, tv)   # pad vocab so the in-kernel contraction tiles cleanly
        table = emb_table if v_pad == v else jnp.pad(emb_table, ((0, v_pad - v), (0, 0)))
        out_flat = _embed_onehot(idx.reshape(n_pad, 1), table, tm, vmem_limit)
    else:
        # Large vocab: batched data-dependent row gather straight from HBM.
        tm = min(256, _round_up(n, 8))
        n_pad = _round_up(n, tm)
        idx = jnp.pad(flat_idx, (0, n_pad - n)) if n_pad != n else flat_idx
        out_flat = _embed_dma_gather(idx, emb_table, tm)

    return out_flat[:n].reshape(b, s, d)


if __name__ == "__main__":
    key = jax.random.PRNGKey(0)
    k_emb, k_idx, k_emb2, k_idx2 = jax.random.split(key, 4)

    batch, seq, embed_dim = 2, 8, 128

    # --- primary (resident one-hot MXU) path: small vocab -------------------------
    vocab_size = 32
    emb_table = jax.random.normal(k_emb, (vocab_size, embed_dim), dtype=jnp.float32)
    index_tensor = jax.random.randint(k_idx, (batch, seq), 0, vocab_size, dtype=jnp.int32)

    out = jax.block_until_ready(item_encoder_forward(index_tensor, emb_table))
    ref = jnp.take(emb_table, index_tensor, axis=0)
    assert out.shape == (batch, seq, embed_dim)
    assert jnp.allclose(out, ref), "one-hot path mismatch vs reference"

    # --- fallback (batched DMA row gather) path: vocab above the one-hot cutoff ---
    big_vocab = 8192
    emb_table2 = jax.random.normal(k_emb2, (big_vocab, embed_dim), dtype=jnp.float32)
    index_tensor2 = jax.random.randint(k_idx2, (batch, seq), 0, big_vocab, dtype=jnp.int32)

    out2 = jax.block_until_ready(item_encoder_forward(index_tensor2, emb_table2))
    ref2 = jnp.take(emb_table2, index_tensor2, axis=0)
    assert out2.shape == (batch, seq, embed_dim)
    assert jnp.allclose(out2, ref2), "dma-gather path mismatch vs reference"

    print("KERNEL_OK")
</pallas_src>

<mosaic_0001>
module attributes {stable_mosaic.version = 11 : i64} {
  func.func @_onehot_gather_kernel(%arg0: i32, %arg1: memref<16x1xi32, #tpu.memory_space<vmem>>, %arg2: memref<32x128xf32, #tpu.memory_space<vmem>>, %arg3: memref<16x128xf32, #tpu.memory_space<vmem>>) attributes {dimension_semantics = [#tpu.dimension_semantics<parallel>], iteration_bounds = array<i64: 1>, scalar_prefetch = 0 : i64, scratch_operands = 0 : i64, tpu.core_type = #tpu.core_type<tc>, window_params = [{transform_indices = @transform_0, window_bounds = array<i64: 16, 1>}, {pipeline_mode = #tpu.pipeline_mode<synchronous>, transform_indices = @transform_1, window_bounds = array<i64: 32, 128>}, {transform_indices = @transform_2, window_bounds = array<i64: 16, 128>}]} {
    %c0 = arith.constant 0 : index
    %c0_0 = arith.constant 0 : index
    %0 = vector.load %arg1[%c0, %c0_0] : memref<16x1xi32, #tpu.memory_space<vmem>>, vector<16x1xi32>
    %1 = tpu.iota {dimensions = array<i32: 1>} : vector<16x32xi32>
    %cst = arith.constant 0.000000e+00 : f32
    %2 = vector.broadcast %cst : f32 to vector<16x128xf32>
    %c0_i32 = arith.constant 0 : i32
    %3 = vector.broadcast %c0_i32 : i32 to vector<16x1xi32>
    %4 = arith.subi %0, %3 : vector<16x1xi32>
    %5 = vector.broadcast %4 : vector<16x1xi32> to vector<16x32xi32>
    %6 = arith.cmpi eq, %1, %5 : vector<16x32xi32>
    %7 = arith.extui %6 : vector<16x32xi1> to vector<16x32xi32>
    %8 = arith.sitofp %7 : vector<16x32xi32> to vector<16x32xf32>
    %c0_1 = arith.constant 0 : index
    %c0_2 = arith.constant 0 : index
    %9 = vector.load %arg2[%c0_1, %c0_2] : memref<32x128xf32, #tpu.memory_space<vmem>>, vector<32x128xf32>
    %cst_3 = arith.constant dense<0.000000e+00> : vector<16x128xf32>
    %10 = tpu.matmul %8, %9, %cst_3 {dimension_numbers = #tpu.dot_dimension_numbers<[1], [0], [0], [1], [0, 0, 1, 1], [], []>} : vector<16x32xf32>, vector<32x128xf32>, vector<16x128xf32> -> vector<16x128xf32>
    %11 = arith.addf %2, %10 : vector<16x128xf32>
    %c0_4 = arith.constant 0 : index
    %c0_5 = arith.constant 0 : index
    %12 = vector.load %arg3[%c0_4, %c0_5] : memref<16x128xf32, #tpu.memory_space<vmem>>, vector<16x128xf32>
    tpu.vector_store %arg3[%c0_4, %c0_5], %11 {strides = array<i32>} : memref<16x128xf32, #tpu.memory_space<vmem>>, vector<16x128xf32>,
    return
  }
  func.func @transform_0(%arg0: i32) -> (i32, i32) {
    %c0_i32 = arith.constant 0 : i32
    %c0_i32_0 = arith.constant 0 : i32
    return %arg0, %c0_i32 : i32, i32
  }
  func.func @transform_1(%arg0: i32) -> (i32, i32) {
    %c0_i32 = arith.constant 0 : i32
    %c0_i32_0 = arith.constant 0 : i32
    %c0_i32_1 = arith.constant 0 : i32
    return %c0_i32, %c0_i32_0 : i32, i32
  }
  func.func @transform_2(%arg0: i32) -> (i32, i32) {
    %c0_i32 = arith.constant 0 : i32
    %c0_i32_0 = arith.constant 0 : i32
    return %arg0, %c0_i32 : i32, i32
  }
}

</mosaic_0001>

<llo_original>
// kernel: tpu_custom_call.1
$region0: #{tpu_custom_call.1}
  #allocation0 [shape = 'u32[]', space=smem, size = 0x4, offset = 0x4, fixed_abs, tag = 'smem constant byte address 0x4 - core index']
  #allocation1 [shape = 'u32[72,128]{1,0:T(1,128)}', space=vmem, size = 0x9000, scoped, tag = 'internal scratch']
  %s0 = inlined_call_operand.vmem [shape: s32[16,1], index: 0, kind: input, shape index: {}]
  %s1 = inlined_call_operand.hbm [shape: f32[32,128], index: 1, kind: input, shape index: {}]
  %s2 = inlined_call_operand.hbm [shape: f32[16,128], index: 2, kind: output, shape index: {}]
  %s3 = sld [smem:[#allocation0]]
  $region22: #{tpu_custom_call.1} parent=0
    _
  %s5 = ssub.s32 1, %s3
  %s6 = scalar_select 0, %s5, %s3
  $region1: #{tpu_custom_call.1} parent=0
    #allocation2 [shape = 'u8[16384]{0}', space=vmem, size = 0x4000, scoped, tag = 'input window, operand 1, single buffered']
    #allocation3 [shape = 's32[1]{0}', space=sflag, size = 0x4, scoped, tag = 'scoped memory for tpu_custom_call.1']
    #allocation4 [shape = 's32[1]{0}', space=sflag, size = 0x4, scoped, tag = 'scoped memory for tpu_custom_call.1']
    #allocation5 [shape = 'u8[8192]{0}', space=vmem, size = 0x2000, scoped, tag = 'output window, operand 0, single buffered']
    %7 = vsyncpa [#allocation3], 0
    %8 = vsyncpa [#allocation4], 0
    // Predicated region
    $region2: #{tpu_custom_call.1} parent=1 // pred_check
      _
    $region3: #{tpu_custom_call.1} parent=1 // pred_check_branch
      %10 = sbr.rel (0) target = $region5
    $region4: #{tpu_custom_call.1} parent=1 // pred_region
      _
    $region5: #{tpu_custom_call.1} parent=1 // pred_fallthru
      _
    // Predicated region
    $region6: #{tpu_custom_call.1} parent=1 // pred_check
      _
    $region7: #{tpu_custom_call.1} parent=1 // pred_check_branch
      %12 = sbr.rel (0) target = $region9
    $region8: #{tpu_custom_call.1} parent=1 // pred_region
      %14 = vsyncadd [#allocation3], 0
      %s15 = sshll.u32 %s1, 4
      %s16 = int_to_ptr.hbm [resolvable:$true] %s15
      %s17 = sshll.u32 [#allocation2], 4
      %s18 = int_to_ptr.vmem [resolvable:$true] %s17
      %23 = dma.hbm_to_vmem [thread:$0]  %s16, 512, %s18, [#allocation3], 128, 128, 8
    $region9: #{tpu_custom_call.1} parent=1 // pred_fallthru
      _
    // Predicated region
    $region10: #{tpu_custom_call.1} parent=1 // pred_check
      _
    $region11: #{tpu_custom_call.1} parent=1 // pred_check_branch
      %25 = sbr.rel (0) target = $region13
    $region12: #{tpu_custom_call.1} parent=1 // pred_region
      %27 = dma.done [#allocation3], 512
    $region13: #{tpu_custom_call.1} parent=1 // pred_fallthru
      _
    %v28 = vld [vmem:[%s0] sm:$0xff]
    %v29 = vld [vmem:[%s0 + $0x8] sm:$0xff]
    %v30 = vlaneseq
    %v31 = vand.u32 %v30, 127
    %32 = vset.pattern.permute.xlu0 0
    %33 = vperm.xlu0 %32, %v28
    %v34 = vpop.permute.xlu0 %33
    %35 = vset.pattern.permute.xlu0 0
    %36 = vperm.xlu0 %35, %v29
    %v37 = vpop.permute.xlu0 %36
    %vm38 = vcmp.eq.s32.totalorder %v31, %v34
    %vm39 = vcmp.eq.s32.totalorder %v31, %v37
    %v40 = vsel %vm38, 1, 0
    %v41 = vsel %vm39, 1, 0
    %v42 = vcvt.s32.f32 %v40
    %v43 = vcvt.s32.f32 %v41
    %v44 = vld [vmem:[#allocation2] sm:$0xff]
    %v45 = vld [vmem:[#allocation2 + $0x8] sm:$0xff]
    %v46 = vld [vmem:[#allocation2 + $0x10] sm:$0xff]
    %v47 = vld [vmem:[#allocation2 + $0x18] sm:$0xff]
    %vm48 = vcmask 261120
    %v50 = vsel %vm48, %v42, 0
    %v53 = vsel %vm48, %v43, 0
    %55 = vmatpush.msra.mxu0 0.0
    %56 = vmatpush.msra.mxu0 0.0
    %57 = vmatpush.msra.mxu0 0.0
    %58 = vmatpush.msra.mxu0 0.0
    %59 = vmatpush.msra.mxu0 0.0
    %60 = vmatpush.msra.mxu0 0.0
    %61 = vmatpush.msra.mxu0 0.0
    %62 = vmatpush.msra.mxu0 0.0
    %63 = vmatpush.msra.mxu0 0.0
    %64 = vmatpush.msra.mxu0 0.0
    %65 = vmatpush.msra.mxu0 0.0
    %66 = vmatpush.msra.mxu0 0.0
    %67 = vmatpush.msra.mxu0 %v47
    %68 = vmatpush.msra.mxu0 %v46
    %69 = vmatpush.msra.mxu0 %v45
    %70 = vmatpush.msra.mxu0 %v44
    %71 = vmatmul.f32.gmra.mxu0 %v50
    %v72 = vpop.f32.mrf.mxu0
    %v73 = vadd.f32 0.0, %v72
    %74 = vmatmul.f32.gmra.mxu0 %v53
    %v75 = vpop.f32.mrf.mxu0
    %v76 = vadd.f32 0.0, %v75
    %77 = vdwg.mxu0
    %78 = vst [vmem:[#allocation5] sm:$0xff] %v73
    %79 = vst [vmem:[#allocation5 + $0x8] sm:$0xff] %v76
    // Predicated region
    $region14: #{tpu_custom_call.1} parent=1 // pred_check
      _
    $region15: #{tpu_custom_call.1} parent=1 // pred_check_branch
      %81 = sbr.rel (0) target = $region17
    $region16: #{tpu_custom_call.1} parent=1 // pred_region
      %83 = vsyncadd [#allocation4], 0
      %s84 = sshll.u32 [#allocation5], 4
      %s85 = int_to_ptr.vmem [resolvable:$true] %s84
      %s86 = sshll.u32 %s2, 4
      %s87 = int_to_ptr.hbm [resolvable:$true] %s86
      %92 = dma.vmem_to_hbm [thread:$0]  %s85, 256, %s87, [#allocation4], 128, 128, 8
    $region17: #{tpu_custom_call.1} parent=1 // pred_fallthru
      _
    // Predicated region
    $region18: #{tpu_custom_call.1} parent=1 // pred_check
      _
    $region19: #{tpu_custom_call.1} parent=1 // pred_check_branch
      %94 = sbr.rel (0) target = $region21
    $region20: #{tpu_custom_call.1} parent=1 // pred_region
      %96 = dma.done [#allocation4], 256
    $region21: #{tpu_custom_call.1} parent=1 // pred_fallthru
      _
    %97 = vsyncpa [#allocation3], 1
    %98 = vsyncpa [#allocation4], 1

</llo_original>
